<compile_context>
chip_gen: v7x
topology: tpu7x:2x2x1
jax: 0.10.0
libtpu: 0.0.40
codegen_flags: <defaults>
</compile_context>

<pallas_src>
import jax
import jax.numpy as jnp
from jax.experimental import pallas as pl
from jax.experimental.pallas import tpu as pltpu

HIDDEN_SIZE = 32
BOTTLENECK = 64
OUT_DIM = 64
LANE = 128
OUT_PAD = ((OUT_DIM + LANE - 1) // LANE) * LANE  # lane-dense head output width (128)


def _round_up(x, m):
    return (x + m - 1) // m * m


def _pick_tile_rows(n, k, itemsize, vmem_budget_bytes=8 * 1024 * 1024):
    """Largest row tile (multiple of 16 for bf16 sublane packing) whose
    double-buffered input block stays within a conservative VMEM budget
    (sized so one codepath also fits v7x's 64 MiB / 32 MiB scoped VMEM)."""
    n16 = _round_up(max(n, 1), 16)
    cap = (vmem_budget_bytes // (2 * k * itemsize)) // 16 * 16
    return max(16, min(n16, 512, cap))


# ----------------------------------------------------------------------------
# Fused Pallas kernel: pool+project -> Linear -> GELU -> Linear, all in VMEM
# ----------------------------------------------------------------------------
def _fused_kernel(x_ref, inv_ref, wp_ref, bb_ref, w1_ref, b1_ref, w2_ref, b2_ref,
                  o_ref):
    # Backbone: mean-pool + Linear(C->hidden) as a single MXU matmul.
    #   x_ref : (tn, C*S_max) bf16, zero-padded past each crop's true S
    #   wp_ref: (C*S_max, hidden) = w_b repeated S_max times along K
    # so x @ wp == sum_s x[:, c, s] @ w_b[c, :]; multiplying by the per-row
    # 1/S gives the exact mean-pool result.  Accumulation is f32.
    h = jnp.dot(x_ref[...], wp_ref[...], preferred_element_type=jnp.float32)
    h = h * inv_ref[...] + bb_ref[...]                        # (tn, hidden) f32

    # Head: Linear -> GELU -> Linear.  Intermediates stay in vregs/VMEM;
    # bias adds and GELU stay in f32 (v5e has no bf16 VPU/EUP path).
    h = jnp.dot(h.astype(w1_ref.dtype), w1_ref[...],
                preferred_element_type=jnp.float32) + b1_ref[...]
    h = jax.nn.gelu(h)
    o_ref[...] = (jnp.dot(h.astype(w2_ref.dtype), w2_ref[...],
                          preferred_element_type=jnp.float32) + b2_ref[...])


def _fused_forward(x_rows, inv_s, wp, bb, w1, b1, w2, b2, *, tile_rows):
    n_pad, k = x_rows.shape
    hidden = wp.shape[1]
    bn = w1.shape[1]
    op = w2.shape[1]
    grid = (n_pad // tile_rows,)

    flops = 2 * n_pad * (k * hidden + hidden * bn + bn * op)
    bytes_accessed = (
        x_rows.size * x_rows.dtype.itemsize
        + inv_s.size * 4
        + wp.size * wp.dtype.itemsize
        + (w1.size + w2.size) * w1.dtype.itemsize
        + (bb.size + b1.size + b2.size) * 4
        + n_pad * op * 4
    )

    return pl.pallas_call(
        _fused_kernel,
        out_shape=jax.ShapeDtypeStruct((n_pad, op), jnp.float32),
        grid=grid,
        in_specs=[
            pl.BlockSpec((tile_rows, k), lambda i: (i, 0)),   # crops (row tile)
            pl.BlockSpec((tile_rows, 1), lambda i: (i, 0)),   # per-row 1/S
            pl.BlockSpec((k, hidden), lambda i: (0, 0)),      # pooled backbone W
            pl.BlockSpec((1, hidden), lambda i: (0, 0)),      # backbone bias
            pl.BlockSpec((hidden, bn), lambda i: (0, 0)),     # head W1
            pl.BlockSpec((1, bn), lambda i: (0, 0)),          # head b1
            pl.BlockSpec((bn, op), lambda i: (0, 0)),         # head W2 (lane-padded)
            pl.BlockSpec((1, op), lambda i: (0, 0)),          # head b2 (lane-padded)
        ],
        out_specs=pl.BlockSpec((tile_rows, op), lambda i: (i, 0)),
        compiler_params=pltpu.CompilerParams(
            # Row tiles are independent -> shard across v7x's 2 TensorCores.
            dimension_semantics=("parallel",),
        ),
        cost_estimate=pl.CostEstimate(
            flops=int(flops),
            transcendentals=int(n_pad * bn),
            bytes_accessed=int(bytes_accessed),
        ),
    )(x_rows, inv_s, wp, bb, w1, b1, w2, b2)


# ----------------------------------------------------------------------------
# MultiCropWrapper forward (glue in plain JAX / Python)
# ----------------------------------------------------------------------------
def multi_crop_forward(x, params, is_training=True):
    """
    x: a single crop (B, C, H, W) or a list of crops with possibly different
       spatial resolutions (same-resolution crops consecutive, as in PyTorch).
    Returns: (total_crops * B, 1, OUT_DIM) float32
    """
    del is_training  # synthetic backbone has no training-dependent branches
    if not isinstance(x, (list, tuple)):
        x = [x]

    # The original module's per-resolution grouping (unique_consecutive +
    # cumsum) exists only so the backbone sees uniform spatial shapes per
    # forward.  The backbone here is per-sample, so zero-padding every crop's
    # flattened spatial axis to S_max and running ONE fused launch is
    # numerically identical and preserves the torch.stack/torch.cat row order.
    C = int(x[0].shape[1])
    s_max = max(int(inp.shape[-2]) * int(inp.shape[-1]) for inp in x)
    k = C * s_max

    rows, inv_rows = [], []
    for crop in x:
        B, Cc, H, W = crop.shape
        assert Cc == C, "all crops must share the channel count"
        S = H * W
        flat = crop.reshape(B, C, S).astype(jnp.float32)
        if S < s_max:
            flat = jnp.pad(flat, ((0, 0), (0, 0), (0, s_max - S)))
        rows.append(flat.reshape(B, k))
        inv_rows.append(jnp.full((B, 1), 1.0 / S, jnp.float32))

    x_rows = jnp.concatenate(rows, axis=0)       # (N, C*S_max)
    inv_s = jnp.concatenate(inv_rows, axis=0)    # (N, 1)
    n = x_rows.shape[0]

    # bf16 activations/weights for the MXU (f32 accumulation inside kernel).
    x_rows = x_rows.astype(jnp.bfloat16)

    tn = _pick_tile_rows(n, k, x_rows.dtype.itemsize)
    n_pad = _round_up(n, tn)
    if n_pad > n:
        x_rows = jnp.pad(x_rows, ((0, n_pad - n), (0, 0)))
        inv_s = jnp.pad(inv_s, ((0, n_pad - n), (0, 0)))

    # Backbone weight repeated along the spatial axis: mean-pool + Linear
    # becomes one lane-dense matmul (per-row 1/S applied in-kernel).
    wp = jnp.repeat(params["w_b"].astype(jnp.bfloat16), s_max, axis=0)  # (C*S_max, H)
    w1 = params["w1"].astype(jnp.bfloat16)
    # Pad head output to 128 lanes -> unmasked lane-dense stores.
    w2 = jnp.pad(params["w2"].astype(jnp.bfloat16), ((0, 0), (0, OUT_PAD - OUT_DIM)))
    b2 = jnp.pad(params["b2"], ((0, 0), (0, OUT_PAD - OUT_DIM)))

    out_pad = _fused_forward(x_rows, inv_s, wp, params["b_b"], w1, params["b1"],
                             w2, b2, tile_rows=tn)                      # (n_pad, 128)

    out = out_pad[:n, :OUT_DIM]
    # Matches output.view(output.shape[0], -1, hidden_size) -> head -> (N, 1, out_dim)
    return out.reshape(n, 1, OUT_DIM)


def init_params(key, in_channels):
    k1, k2, k3 = jax.random.split(key, 3)
    return {
        "w_b": jax.random.normal(k1, (in_channels, HIDDEN_SIZE), jnp.float32) * 0.02,
        "b_b": jnp.zeros((1, HIDDEN_SIZE), jnp.float32),
        "w1": jax.random.normal(k2, (HIDDEN_SIZE, BOTTLENECK), jnp.float32) * 0.02,
        "b1": jnp.zeros((1, BOTTLENECK), jnp.float32),
        "w2": jax.random.normal(k3, (BOTTLENECK, OUT_DIM), jnp.float32) * 0.02,
        "b2": jnp.zeros((1, OUT_DIM), jnp.float32),
    }


if __name__ == "__main__":
    key = jax.random.PRNGKey(0)
    kp, kx1, kx2, kx3, kx4 = jax.random.split(key, 5)

    B, C = 2, 4
    params = init_params(kp, C)

    # Multi-crop input: 2 "global" crops at 16x16, then 2 "local" crops at 8x8
    # (same-resolution crops are consecutive, as the module assumes).
    x = [
        jax.random.normal(kx1, (B, C, 16, 16), jnp.float32),
        jax.random.normal(kx2, (B, C, 16, 16), jnp.float32),
        jax.random.normal(kx3, (B, C, 8, 8), jnp.float32),
        jax.random.normal(kx4, (B, C, 8, 8), jnp.float32),
    ]

    out = multi_crop_forward(x, params, is_training=True)
    out = jax.block_until_ready(out)

    assert out.shape == (4 * B, 1, OUT_DIM), out.shape
    assert out.dtype == jnp.float32

    # TODO(synk): the real backbone/head are user-supplied nn.Modules (e.g. a
    # ViT/UNETR backbone and a DINO head); synthetic pool+linear / MLP stand in.
    print("KERNEL_OK")
</pallas_src>

<mosaic_0001>
module attributes {stable_mosaic.version = 11 : i64} {
  func.func @_fused_kernel(%arg0: i32, %arg1: memref<16x1024xbf16, #tpu.memory_space<vmem>>, %arg2: memref<16x1xf32, #tpu.memory_space<vmem>>, %arg3: memref<1024x32xbf16, #tpu.memory_space<vmem>>, %arg4: memref<1x32xf32, #tpu.memory_space<vmem>>, %arg5: memref<32x64xbf16, #tpu.memory_space<vmem>>, %arg6: memref<1x64xf32, #tpu.memory_space<vmem>>, %arg7: memref<64x128xbf16, #tpu.memory_space<vmem>>, %arg8: memref<1x128xf32, #tpu.memory_space<vmem>>, %arg9: memref<16x128xf32, #tpu.memory_space<vmem>>) attributes {dimension_semantics = [#tpu.dimension_semantics<parallel>], iteration_bounds = array<i64: 1>, scalar_prefetch = 0 : i64, scratch_operands = 0 : i64, tpu.core_type = #tpu.core_type<tc>, window_params = [{transform_indices = @transform_0, window_bounds = array<i64: 16, 1024>}, {transform_indices = @transform_1, window_bounds = array<i64: 16, 1>}, {pipeline_mode = #tpu.pipeline_mode<synchronous>, transform_indices = @transform_2, window_bounds = array<i64: 1024, 32>}, {pipeline_mode = #tpu.pipeline_mode<synchronous>, transform_indices = @transform_3, window_bounds = array<i64: 1, 32>}, {pipeline_mode = #tpu.pipeline_mode<synchronous>, transform_indices = @transform_4, window_bounds = array<i64: 32, 64>}, {pipeline_mode = #tpu.pipeline_mode<synchronous>, transform_indices = @transform_5, window_bounds = array<i64: 1, 64>}, {pipeline_mode = #tpu.pipeline_mode<synchronous>, transform_indices = @transform_6, window_bounds = array<i64: 64, 128>}, {pipeline_mode = #tpu.pipeline_mode<synchronous>, transform_indices = @transform_7, window_bounds = array<i64: 1, 128>}, {transform_indices = @transform_8, window_bounds = array<i64: 16, 128>}]} {
    %c0 = arith.constant 0 : index
    %c0_0 = arith.constant 0 : index
    %0 = vector.load %arg1[%c0, %c0_0] : memref<16x1024xbf16, #tpu.memory_space<vmem>>, vector<16x1024xbf16>
    %c0_1 = arith.constant 0 : index
    %c0_2 = arith.constant 0 : index
    %1 = vector.load %arg3[%c0_1, %c0_2] : memref<1024x32xbf16, #tpu.memory_space<vmem>>, vector<1024x32xbf16>
    %cst = arith.constant dense<0.000000e+00> : vector<16x32xf32>
    %2 = tpu.matmul %0, %1, %cst {dimension_numbers = #tpu.dot_dimension_numbers<[1], [0], [0], [1], [0, 0, 1, 1], [], []>} : vector<16x1024xbf16>, vector<1024x32xbf16>, vector<16x32xf32> -> vector<16x32xf32>
    %c0_3 = arith.constant 0 : index
    %c0_4 = arith.constant 0 : index
    %3 = vector.load %arg2[%c0_3, %c0_4] : memref<16x1xf32, #tpu.memory_space<vmem>>, vector<16x1xf32>
    %4 = vector.broadcast %3 : vector<16x1xf32> to vector<16x32xf32>
    %5 = arith.mulf %2, %4 : vector<16x32xf32>
    %c0_5 = arith.constant 0 : index
    %c0_6 = arith.constant 0 : index
    %6 = vector.load %arg4[%c0_5, %c0_6] : memref<1x32xf32, #tpu.memory_space<vmem>>, vector<1x32xf32>
    %7 = vector.broadcast %6 : vector<1x32xf32> to vector<16x32xf32>
    %8 = arith.addf %5, %7 : vector<16x32xf32>
    %9 = arith.truncf %8 : vector<16x32xf32> to vector<16x32xbf16>
    %c0_7 = arith.constant 0 : index
    %c0_8 = arith.constant 0 : index
    %10 = vector.load %arg5[%c0_7, %c0_8] : memref<32x64xbf16, #tpu.memory_space<vmem>>, vector<32x64xbf16>
    %cst_9 = arith.constant dense<0.000000e+00> : vector<16x64xf32>
    %11 = tpu.matmul %9, %10, %cst_9 {dimension_numbers = #tpu.dot_dimension_numbers<[1], [0], [0], [1], [0, 0, 1, 1], [], []>} : vector<16x32xbf16>, vector<32x64xbf16>, vector<16x64xf32> -> vector<16x64xf32>
    %c0_10 = arith.constant 0 : index
    %c0_11 = arith.constant 0 : index
    %12 = vector.load %arg6[%c0_10, %c0_11] : memref<1x64xf32, #tpu.memory_space<vmem>>, vector<1x64xf32>
    %13 = vector.broadcast %12 : vector<1x64xf32> to vector<16x64xf32>
    %14 = arith.addf %11, %13 : vector<16x64xf32>
    %15 = arith.mulf %14, %14 : vector<16x64xf32>
    %16 = arith.mulf %14, %15 : vector<16x64xf32>
    %cst_12 = arith.constant 4.471500e-02 : f32
    %17 = vector.broadcast %cst_12 : f32 to vector<16x64xf32>
    %18 = arith.mulf %17, %16 : vector<16x64xf32>
    %19 = arith.addf %14, %18 : vector<16x64xf32>
    %cst_13 = arith.constant 0.797884583 : f32
    %20 = vector.broadcast %cst_13 : f32 to vector<16x64xf32>
    %21 = arith.mulf %20, %19 : vector<16x64xf32>
    %22 = math.tanh %21 : vector<16x64xf32>
    %cst_14 = arith.constant 1.000000e+00 : f32
    %23 = vector.broadcast %cst_14 : f32 to vector<16x64xf32>
    %24 = arith.addf %23, %22 : vector<16x64xf32>
    %cst_15 = arith.constant 5.000000e-01 : f32
    %25 = vector.broadcast %cst_15 : f32 to vector<16x64xf32>
    %26 = arith.mulf %25, %24 : vector<16x64xf32>
    %27 = arith.mulf %14, %26 : vector<16x64xf32>
    %28 = arith.truncf %27 : vector<16x64xf32> to vector<16x64xbf16>
    %c0_16 = arith.constant 0 : index
    %c0_17 = arith.constant 0 : index
    %29 = vector.load %arg7[%c0_16, %c0_17] : memref<64x128xbf16, #tpu.memory_space<vmem>>, vector<64x128xbf16>
    %cst_18 = arith.constant dense<0.000000e+00> : vector<16x128xf32>
    %30 = tpu.matmul %28, %29, %cst_18 {dimension_numbers = #tpu.dot_dimension_numbers<[1], [0], [0], [1], [0, 0, 1, 1], [], []>} : vector<16x64xbf16>, vector<64x128xbf16>, vector<16x128xf32> -> vector<16x128xf32>
    %c0_19 = arith.constant 0 : index
    %c0_20 = arith.constant 0 : index
    %31 = vector.load %arg8[%c0_19, %c0_20] : memref<1x128xf32, #tpu.memory_space<vmem>>, vector<1x128xf32>
    %32 = vector.broadcast %31 : vector<1x128xf32> to vector<16x128xf32>
    %33 = arith.addf %30, %32 : vector<16x128xf32>
    %c0_21 = arith.constant 0 : index
    %c0_22 = arith.constant 0 : index
    %34 = vector.load %arg9[%c0_21, %c0_22] : memref<16x128xf32, #tpu.memory_space<vmem>>, vector<16x128xf32>
    tpu.vector_store %arg9[%c0_21, %c0_22], %33 {strides = array<i32>} : memref<16x128xf32, #tpu.memory_space<vmem>>, vector<16x128xf32>,
    return
  }
  func.func @transform_0(%arg0: i32) -> (i32, i32) {
    %c0_i32 = arith.constant 0 : i32
    %c0_i32_0 = arith.constant 0 : i32
    return %arg0, %c0_i32 : i32, i32
  }
  func.func @transform_1(%arg0: i32) -> (i32, i32) {
    %c0_i32 = arith.constant 0 : i32
    %c0_i32_0 = arith.constant 0 : i32
    return %arg0, %c0_i32 : i32, i32
  }
  func.func @transform_2(%arg0: i32) -> (i32, i32) {
    %c0_i32 = arith.constant 0 : i32
    %c0_i32_0 = arith.constant 0 : i32
    %c0_i32_1 = arith.constant 0 : i32
    return %c0_i32, %c0_i32_0 : i32, i32
  }
  func.func @transform_3(%arg0: i32) -> (i32, i32) {
    %c0_i32 = arith.constant 0 : i32
    %c0_i32_0 = arith.constant 0 : i32
    %c0_i32_1 = arith.constant 0 : i32
    return %c0_i32, %c0_i32_0 : i32, i32
  }
  func.func @transform_4(%arg0: i32) -> (i32, i32) {
    %c0_i32 = arith.constant 0 : i32
    %c0_i32_0 = arith.constant 0 : i32
    %c0_i32_1 = arith.constant 0 : i32
    return %c0_i32, %c0_i32_0 : i32, i32
  }
  func.func @transform_5(%arg0: i32) -> (i32, i32) {
    %c0_i32 = arith.constant 0 : i32
    %c0_i32_0 = arith.constant 0 : i32
    %c0_i32_1 = arith.constant 0 : i32
    return %c0_i32, %c0_i32_0 : i32, i32
  }
  func.func @transform_6(%arg0: i32) -> (i32, i32) {
    %c0_i32 = arith.constant 0 : i32
    %c0_i32_0 = arith.constant 0 : i32
    %c0_i32_1 = arith.constant 0 : i32
    return %c0_i32, %c0_i32_0 : i32, i32
  }
  func.func @transform_7(%arg0: i32) -> (i32, i32) {
    %c0_i32 = arith.constant 0 : i32
    %c0_i32_0 = arith.constant 0 : i32
    %c0_i32_1 = arith.constant 0 : i32
    return %c0_i32, %c0_i32_0 : i32, i32
  }
  func.func @transform_8(%arg0: i32) -> (i32, i32) {
    %c0_i32 = arith.constant 0 : i32
    %c0_i32_0 = arith.constant 0 : i32
    return %arg0, %c0_i32 : i32, i32
  }
}

</mosaic_0001>

<llo_original>
// kernel: tpu_custom_call.1
$region0: #{tpu_custom_call.1}
  #allocation0 [shape = 'u32[]', space=smem, size = 0x4, offset = 0x4, fixed_abs, tag = 'smem constant byte address 0x4 - core index']
  #allocation1 [shape = 'u32[144,128]{1,0:T(1,128)}', space=vmem, size = 0x12000, scoped, tag = 'internal scratch']
  %s0 = inlined_call_operand.vmem [shape: bf16[16,1024], index: 0, kind: input, shape index: {}]
  %s1 = inlined_call_operand.vmem [shape: f32[16,1], index: 1, kind: input, shape index: {}]
  %s2 = inlined_call_operand.vmem [shape: bf16[1024,32], index: 2, kind: input, shape index: {}]
  %s3 = inlined_call_operand.vmem [shape: f32[1,32], index: 3, kind: input, shape index: {}]
  %s4 = inlined_call_operand.vmem [shape: bf16[32,64], index: 4, kind: input, shape index: {}]
  %s5 = inlined_call_operand.vmem [shape: f32[1,64], index: 5, kind: input, shape index: {}]
  %s6 = inlined_call_operand.vmem [shape: bf16[64,128], index: 6, kind: input, shape index: {}]
  %s7 = inlined_call_operand.vmem [shape: f32[1,128], index: 7, kind: input, shape index: {}]
  %s8 = inlined_call_operand.hbm [shape: f32[16,128], index: 8, kind: output, shape index: {}]
  %s9 = sld [smem:[#allocation0]]
  $region42: #{tpu_custom_call.1} parent=0
    _
  %s11 = ssub.s32 1, %s9
  %s12 = scalar_select 0, %s11, %s9
  $region1: #{tpu_custom_call.1} parent=0
    #allocation2 [shape = 'u8[8192]{0}', space=vmem, size = 0x2000, scoped, tag = 'output window, operand 0, single buffered']
    #allocation3 [shape = 's32[1]{0}', space=sflag, size = 0x4, scoped, tag = 'scoped memory for tpu_custom_call.1']
    %13 = vsyncpa [#allocation3], 0
    // Predicated region
    $region2: #{tpu_custom_call.1} parent=1 // pred_check
      _
    $region3: #{tpu_custom_call.1} parent=1 // pred_check_branch
      %15 = sbr.rel (0) target = $region5
    $region4: #{tpu_custom_call.1} parent=1 // pred_region
      _
    $region5: #{tpu_custom_call.1} parent=1 // pred_fallthru
      _
    // Predicated region
    $region6: #{tpu_custom_call.1} parent=1 // pred_check
      _
    $region7: #{tpu_custom_call.1} parent=1 // pred_check_branch
      %17 = sbr.rel (0) target = $region9
    $region8: #{tpu_custom_call.1} parent=1 // pred_region
      _
    $region9: #{tpu_custom_call.1} parent=1 // pred_fallthru
      _
    // Predicated region
    $region10: #{tpu_custom_call.1} parent=1 // pred_check
      _
    $region11: #{tpu_custom_call.1} parent=1 // pred_check_branch
      %19 = sbr.rel (0) target = $region13
    $region12: #{tpu_custom_call.1} parent=1 // pred_region
      _
    $region13: #{tpu_custom_call.1} parent=1 // pred_fallthru
      _
    // Predicated region
    $region14: #{tpu_custom_call.1} parent=1 // pred_check
      _
    $region15: #{tpu_custom_call.1} parent=1 // pred_check_branch
      %21 = sbr.rel (0) target = $region17
    $region16: #{tpu_custom_call.1} parent=1 // pred_region
      _
    $region17: #{tpu_custom_call.1} parent=1 // pred_fallthru
      _
    // Predicated region
    $region18: #{tpu_custom_call.1} parent=1 // pred_check
      _
    $region19: #{tpu_custom_call.1} parent=1 // pred_check_branch
      %23 = sbr.rel (0) target = $region21
    $region20: #{tpu_custom_call.1} parent=1 // pred_region
      _
    $region21: #{tpu_custom_call.1} parent=1 // pred_fallthru
      _
    // Predicated region
    $region22: #{tpu_custom_call.1} parent=1 // pred_check
      _
    $region23: #{tpu_custom_call.1} parent=1 // pred_check_branch
      %25 = sbr.rel (0) target = $region25
    $region24: #{tpu_custom_call.1} parent=1 // pred_region
      _
    $region25: #{tpu_custom_call.1} parent=1 // pred_fallthru
      _
    // Predicated region
    $region26: #{tpu_custom_call.1} parent=1 // pred_check
      _
    $region27: #{tpu_custom_call.1} parent=1 // pred_check_branch
      %27 = sbr.rel (0) target = $region29
    $region28: #{tpu_custom_call.1} parent=1 // pred_region
      _
    $region29: #{tpu_custom_call.1} parent=1 // pred_fallthru
      _
    // Predicated region
    $region30: #{tpu_custom_call.1} parent=1 // pred_check
      _
    $region31: #{tpu_custom_call.1} parent=1 // pred_check_branch
      %29 = sbr.rel (0) target = $region33
    $region32: #{tpu_custom_call.1} parent=1 // pred_region
      _
    $region33: #{tpu_custom_call.1} parent=1 // pred_fallthru
      _
    %v31 = vld [vmem:[%s0] sm:$0xff]
    %v32 = vld [vmem:[%s0 + $0x8] sm:$0xff]
    %v33 = vld [vmem:[%s0 + $0x10] sm:$0xff]
    %v34 = vld [vmem:[%s0 + $0x18] sm:$0xff]
    %v35 = vld [vmem:[%s0 + $0x20] sm:$0xff]
    %v36 = vld [vmem:[%s0 + $0x28] sm:$0xff]
    %v37 = vld [vmem:[%s0 + $0x30] sm:$0xff]
    %v38 = vld [vmem:[%s0 + $0x38] sm:$0xff]
    %v39 = vld [vmem:[%s2] sm:$0xf]
    %v40 = vld [vmem:[%s2 + $0x4] sm:$0xf]
    %v41 = vld [vmem:[%s2 + $0x8] sm:$0xf]
    %v42 = vld [vmem:[%s2 + $0xc] sm:$0xf]
    %v43 = vld [vmem:[%s2 + $0x10] sm:$0xf]
    %v44 = vld [vmem:[%s2 + $0x14] sm:$0xf]
    %v45 = vld [vmem:[%s2 + $0x18] sm:$0xf]
    %v46 = vld [vmem:[%s2 + $0x1c] sm:$0xf]
    %v47 = vld [vmem:[%s2 + $0x20] sm:$0xf]
    %v48 = vld [vmem:[%s2 + $0x24] sm:$0xf]
    %v49 = vld [vmem:[%s2 + $0x28] sm:$0xf]
    %v50 = vld [vmem:[%s2 + $0x2c] sm:$0xf]
    %v51 = vld [vmem:[%s2 + $0x30] sm:$0xf]
    %v52 = vld [vmem:[%s2 + $0x34] sm:$0xf]
    %v53 = vld [vmem:[%s2 + $0x38] sm:$0xf]
    %v54 = vld [vmem:[%s2 + $0x3c] sm:$0xf]
    %v55 = vld [vmem:[%s2 + $0x40] sm:$0xf]
    %v56 = vld [vmem:[%s2 + $0x44] sm:$0xf]
    %v57 = vld [vmem:[%s2 + $0x48] sm:$0xf]
    %v58 = vld [vmem:[%s2 + $0x4c] sm:$0xf]
    %v59 = vld [vmem:[%s2 + $0x50] sm:$0xf]
    %v60 = vld [vmem:[%s2 + $0x54] sm:$0xf]
    %v61 = vld [vmem:[%s2 + $0x58] sm:$0xf]
    %v62 = vld [vmem:[%s2 + $0x5c] sm:$0xf]
    %v63 = vld [vmem:[%s2 + $0x60] sm:$0xf]
    %v64 = vld [vmem:[%s2 + $0x64] sm:$0xf]
    %v65 = vld [vmem:[%s2 + $0x68] sm:$0xf]
    %v66 = vld [vmem:[%s2 + $0x6c] sm:$0xf]
    %v67 = vld [vmem:[%s2 + $0x70] sm:$0xf]
    %v68 = vld [vmem:[%s2 + $0x74] sm:$0xf]
    %v69 = vld [vmem:[%s2 + $0x78] sm:$0xf]
    %v70 = vld [vmem:[%s2 + $0x7c] sm:$0xf]
    %v71 = vld [vmem:[%s2 + $0x80] sm:$0xf]
    %v72 = vld [vmem:[%s2 + $0x84] sm:$0xf]
    %v73 = vld [vmem:[%s2 + $0x88] sm:$0xf]
    %v74 = vld [vmem:[%s2 + $0x8c] sm:$0xf]
    %v75 = vld [vmem:[%s2 + $0x90] sm:$0xf]
    %v76 = vld [vmem:[%s2 + $0x94] sm:$0xf]
    %v77 = vld [vmem:[%s2 + $0x98] sm:$0xf]
    %v78 = vld [vmem:[%s2 + $0x9c] sm:$0xf]
    %v79 = vld [vmem:[%s2 + $0xa0] sm:$0xf]
    %v80 = vld [vmem:[%s2 + $0xa4] sm:$0xf]
    %v81 = vld [vmem:[%s2 + $0xa8] sm:$0xf]
    %v82 = vld [vmem:[%s2 + $0xac] sm:$0xf]
    %v83 = vld [vmem:[%s2 + $0xb0] sm:$0xf]
    %v84 = vld [vmem:[%s2 + $0xb4] sm:$0xf]
    %v85 = vld [vmem:[%s2 + $0xb8] sm:$0xf]
    %v86 = vld [vmem:[%s2 + $0xbc] sm:$0xf]
    %v87 = vld [vmem:[%s2 + $0xc0] sm:$0xf]
    %v88 = vld [vmem:[%s2 + $0xc4] sm:$0xf]
    %v89 = vld [vmem:[%s2 + $0xc8] sm:$0xf]
    %v90 = vld [vmem:[%s2 + $0xcc] sm:$0xf]
    %v91 = vld [vmem:[%s2 + $0xd0] sm:$0xf]
    %v92 = vld [vmem:[%s2 + $0xd4] sm:$0xf]
    %v93 = vld [vmem:[%s2 + $0xd8] sm:$0xf]
    %v94 = vld [vmem:[%s2 + $0xdc] sm:$0xf]
    %v95 = vld [vmem:[%s2 + $0xe0] sm:$0xf]
    %v96 = vld [vmem:[%s2 + $0xe4] sm:$0xf]
    %v97 = vld [vmem:[%s2 + $0xe8] sm:$0xf]
    %v98 = vld [vmem:[%s2 + $0xec] sm:$0xf]
    %v99 = vld [vmem:[%s2 + $0xf0] sm:$0xf]
    %v100 = vld [vmem:[%s2 + $0xf4] sm:$0xf]
    %v101 = vld [vmem:[%s2 + $0xf8] sm:$0xf]
    %v102 = vld [vmem:[%s2 + $0xfc] sm:$0xf]
    %v103 = vld [vmem:[%s2 + $0x100] sm:$0xf]
    %v104 = vld [vmem:[%s2 + $0x104] sm:$0xf]
    %v105 = vld [vmem:[%s2 + $0x108] sm:$0xf]
    %v106 = vld [vmem:[%s2 + $0x10c] sm:$0xf]
    %v107 = vld [vmem:[%s2 + $0x110] sm:$0xf]
    %v108 = vld [vmem:[%s2 + $0x114] sm:$0xf]
    %v109 = vld [vmem:[%s2 + $0x118] sm:$0xf]
    %v110 = vld [vmem:[%s2 + $0x11c] sm:$0xf]
    %v111 = vld [vmem:[%s2 + $0x120] sm:$0xf]
    %v112 = vld [vmem:[%s2 + $0x124] sm:$0xf]
    %v113 = vld [vmem:[%s2 + $0x128] sm:$0xf]
    %v114 = vld [vmem:[%s2 + $0x12c] sm:$0xf]
    %v115 = vld [vmem:[%s2 + $0x130] sm:$0xf]
    %v116 = vld [vmem:[%s2 + $0x134] sm:$0xf]
    %v117 = vld [vmem:[%s2 + $0x138] sm:$0xf]
    %v118 = vld [vmem:[%s2 + $0x13c] sm:$0xf]
    %v119 = vld [vmem:[%s2 + $0x140] sm:$0xf]
    %v120 = vld [vmem:[%s2 + $0x144] sm:$0xf]
    %v121 = vld [vmem:[%s2 + $0x148] sm:$0xf]
    %v122 = vld [vmem:[%s2 + $0x14c] sm:$0xf]
    %v123 = vld [vmem:[%s2 + $0x150] sm:$0xf]
    %v124 = vld [vmem:[%s2 + $0x154] sm:$0xf]
    %v125 = vld [vmem:[%s2 + $0x158] sm:$0xf]
    %v126 = vld [vmem:[%s2 + $0x15c] sm:$0xf]
    %v127 = vld [vmem:[%s2 + $0x160] sm:$0xf]
    %v128 = vld [vmem:[%s2 + $0x164] sm:$0xf]
    %v129 = vld [vmem:[%s2 + $0x168] sm:$0xf]
    %v130 = vld [vmem:[%s2 + $0x16c] sm:$0xf]
    %v131 = vld [vmem:[%s2 + $0x170] sm:$0xf]
    %v132 = vld [vmem:[%s2 + $0x174] sm:$0xf]
    %v133 = vld [vmem:[%s2 + $0x178] sm:$0xf]
    %v134 = vld [vmem:[%s2 + $0x17c] sm:$0xf]
    %v135 = vld [vmem:[%s2 + $0x180] sm:$0xf]
    %v136 = vld [vmem:[%s2 + $0x184] sm:$0xf]
    %v137 = vld [vmem:[%s2 + $0x188] sm:$0xf]
    %v138 = vld [vmem:[%s2 + $0x18c] sm:$0xf]
    %v139 = vld [vmem:[%s2 + $0x190] sm:$0xf]
    %v140 = vld [vmem:[%s2 + $0x194] sm:$0xf]
    %v141 = vld [vmem:[%s2 + $0x198] sm:$0xf]
    %v142 = vld [vmem:[%s2 + $0x19c] sm:$0xf]
    %v143 = vld [vmem:[%s2 + $0x1a0] sm:$0xf]
    %v144 = vld [vmem:[%s2 + $0x1a4] sm:$0xf]
    %v145 = vld [vmem:[%s2 + $0x1a8] sm:$0xf]
    %v146 = vld [vmem:[%s2 + $0x1ac] sm:$0xf]
    %v147 = vld [vmem:[%s2 + $0x1b0] sm:$0xf]
    %v148 = vld [vmem:[%s2 + $0x1b4] sm:$0xf]
    %v149 = vld [vmem:[%s2 + $0x1b8] sm:$0xf]
    %v150 = vld [vmem:[%s2 + $0x1bc] sm:$0xf]
    %v151 = vld [vmem:[%s2 + $0x1c0] sm:$0xf]
    %v152 = vld [vmem:[%s2 + $0x1c4] sm:$0xf]
    %v153 = vld [vmem:[%s2 + $0x1c8] sm:$0xf]
    %v154 = vld [vmem:[%s2 + $0x1cc] sm:$0xf]
    %v155 = vld [vmem:[%s2 + $0x1d0] sm:$0xf]
    %v156 = vld [vmem:[%s2 + $0x1d4] sm:$0xf]
    %v157 = vld [vmem:[%s2 + $0x1d8] sm:$0xf]
    %v158 = vld [vmem:[%s2 + $0x1dc] sm:$0xf]
    %v159 = vld [vmem:[%s2 + $0x1e0] sm:$0xf]
    %v160 = vld [vmem:[%s2 + $0x1e4] sm:$0xf]
    %v161 = vld [vmem:[%s2 + $0x1e8] sm:$0xf]
    %v162 = vld [vmem:[%s2 + $0x1ec] sm:$0xf]
    %v163 = vld [vmem:[%s2 + $0x1f0] sm:$0xf]
    %v164 = vld [vmem:[%s2 + $0x1f4] sm:$0xf]
    %v165 = vld [vmem:[%s2 + $0x1f8] sm:$0xf]
    %v166 = vld [vmem:[%s2 + $0x1fc] sm:$0xf]
    %v175 = vunpack.c.l.b16 %v31
    %v176 = vunpack.c.h.b16 %v31
    %v177 = vunpack.c.l.b16 %v32
    %v178 = vunpack.c.h.b16 %v32
    %v179 = vunpack.c.l.b16 %v33
    %v180 = vunpack.c.h.b16 %v33
    %v181 = vunpack.c.l.b16 %v34
    %v182 = vunpack.c.h.b16 %v34
    %v183 = vunpack.c.l.b16 %v35
    %v184 = vunpack.c.h.b16 %v35
    %v185 = vunpack.c.l.b16 %v36
    %v186 = vunpack.c.h.b16 %v36
    %v187 = vunpack.c.l.b16 %v37
    %v188 = vunpack.c.h.b16 %v37
    %v189 = vunpack.c.l.b16 %v38
    %v190 = vunpack.c.h.b16 %v38
    %v191 = vpack.c.b16 %v183, %v175
    %v192 = vpack.c.b16 %v184, %v176
    %v193 = vpack.c.b16 %v185, %v177
    %v194 = vpack.c.b16 %v186, %v178
    %v195 = vpack.c.b16 %v187, %v179
    %v196 = vpack.c.b16 %v188, %v180
    %v197 = vpack.c.b16 %v189, %v181
    %v198 = vpack.c.b16 %v190, %v182
    %v335 = vunpack.c.l.b16 %v39
    %v336 = vunpack.c.l.b16 %v40
    %v337 = vunpack.c.l.b16 %v41
    %v338 = vunpack.c.l.b16 %v42
    %v339 = vunpack.c.l.b16 %v43
    %v340 = vunpack.c.l.b16 %v44
    %v341 = vunpack.c.l.b16 %v45
    %v342 = vunpack.c.l.b16 %v46
    %v343 = vunpack.c.l.b16 %v47
    %v344 = vunpack.c.l.b16 %v48
    %v345 = vunpack.c.l.b16 %v49
    %v346 = vunpack.c.l.b16 %v50
    %v347 = vunpack.c.l.b16 %v51
    %v348 = vunpack.c.l.b16 %v52
    %v349 = vunpack.c.l.b16 %v53
    %v350 = vunpack.c.l.b16 %v54
    %v351 = vunpack.c.l.b16 %v55
    %v352 = vunpack.c.l.b16 %v56
    %v353 = vunpack.c.l.b16 %v57
    %v354 = vunpack.c.l.b16 %v58
    %v355 = vunpack.c.l.b16 %v59
    %v356 = vunpack.c.l.b16 %v60
    %v357 = vunpack.c.l.b16 %v61
    %v358 = vunpack.c.l.b16 %v62
    %v359 = vunpack.c.l.b16 %v63
    %v360 = vunpack.c.l.b16 %v64
    %v361 = vunpack.c.l.b16 %v65
    %v362 = vunpack.c.l.b16 %v66
    %v363 = vunpack.c.l.b16 %v67
    %v364 = vunpack.c.l.b16 %v68
    %v365 = vunpack.c.l.b16 %v69
    %v366 = vunpack.c.l.b16 %v70
    %v367 = vunpack.c.l.b16 %v71
    %v368 = vunpack.c.l.b16 %v72
    %v369 = vunpack.c.l.b16 %v73
    %v370 = vunpack.c.l.b16 %v74
    %v371 = vunpack.c.l.b16 %v75
    %v372 = vunpack.c.l.b16 %v76
    %v373 = vunpack.c.l.b16 %v77
    %v374 = vunpack.c.l.b16 %v78
    %v375 = vunpack.c.l.b16 %v79
    %v376 = vunpack.c.l.b16 %v80
    %v377 = vunpack.c.l.b16 %v81
    %v378 = vunpack.c.l.b16 %v82
    %v379 = vunpack.c.l.b16 %v83
    %v380 = vunpack.c.l.b16 %v84
    %v381 = vunpack.c.l.b16 %v85
    %v382 = vunpack.c.l.b16 %v86
    %v383 = vunpack.c.l.b16 %v87
    %v384 = vunpack.c.l.b16 %v88
    %v385 = vunpack.c.l.b16 %v89
    %v386 = vunpack.c.l.b16 %v90
    %v387 = vunpack.c.l.b16 %v91
    %v388 = vunpack.c.l.b16 %v92
    %v389 = vunpack.c.l.b16 %v93
    %v390 = vunpack.c.l.b16 %v94
    %v391 = vunpack.c.l.b16 %v95
    %v392 = vunpack.c.l.b16 %v96
    %v393 = vunpack.c.l.b16 %v97
    %v394 = vunpack.c.l.b16 %v98
    %v395 = vunpack.c.l.b16 %v99
    %v396 = vunpack.c.l.b16 %v100
    %v397 = vunpack.c.l.b16 %v101
    %v398 = vunpack.c.l.b16 %v102
    %v399 = vunpack.c.l.b16 %v103
    %v400 = vunpack.c.l.b16 %v104
    %v401 = vunpack.c.l.b16 %v105
    %v402 = vunpack.c.l.b16 %v106
    %v403 = vunpack.c.l.b16 %v107
    %v404 = vunpack.c.l.b16 %v108
    %v405 = vunpack.c.l.b16 %v109
    %v406 = vunpack.c.l.b16 %v110
    %v407 = vunpack.c.l.b16 %v111
    %v408 = vunpack.c.l.b16 %v112
    %v409 = vunpack.c.l.b16 %v113
    %v410 = vunpack.c.l.b16 %v114
    %v411 = vunpack.c.l.b16 %v115
    %v412 = vunpack.c.l.b16 %v116
    %v413 = vunpack.c.l.b16 %v117
    %v414 = vunpack.c.l.b16 %v118
    %v415 = vunpack.c.l.b16 %v119
    %v416 = vunpack.c.l.b16 %v120
    %v417 = vunpack.c.l.b16 %v121
    %v418 = vunpack.c.l.b16 %v122
    %v419 = vunpack.c.l.b16 %v123
    %v420 = vunpack.c.l.b16 %v124
    %v421 = vunpack.c.l.b16 %v125
    %v422 = vunpack.c.l.b16 %v126
    %v423 = vunpack.c.l.b16 %v127
    %v424 = vunpack.c.l.b16 %v128
    %v425 = vunpack.c.l.b16 %v129
    %v426 = vunpack.c.l.b16 %v130
    %v427 = vunpack.c.l.b16 %v131
    %v428 = vunpack.c.l.b16 %v132
    %v429 = vunpack.c.l.b16 %v133
    %v430 = vunpack.c.l.b16 %v134
    %v431 = vunpack.c.l.b16 %v135
    %v432 = vunpack.c.l.b16 %v136
    %v433 = vunpack.c.l.b16 %v137
    %v434 = vunpack.c.l.b16 %v138
    %v435 = vunpack.c.l.b16 %v139
    %v436 = vunpack.c.l.b16 %v140
    %v437 = vunpack.c.l.b16 %v141
    %v438 = vunpack.c.l.b16 %v142
    %v439 = vunpack.c.l.b16 %v143
    %v440 = vunpack.c.l.b16 %v144
    %v441 = vunpack.c.l.b16 %v145
    %v442 = vunpack.c.l.b16 %v146
    %v443 = vunpack.c.l.b16 %v147
    %v444 = vunpack.c.l.b16 %v148
    %v445 = vunpack.c.l.b16 %v149
    %v446 = vunpack.c.l.b16 %v150
    %v447 = vunpack.c.l.b16 %v151
    %v448 = vunpack.c.l.b16 %v152
    %v449 = vunpack.c.l.b16 %v153
    %v450 = vunpack.c.l.b16 %v154
    %v451 = vunpack.c.l.b16 %v155
    %v452 = vunpack.c.l.b16 %v156
    %v453 = vunpack.c.l.b16 %v157
    %v454 = vunpack.c.l.b16 %v158
    %v455 = vunpack.c.l.b16 %v159
    %v456 = vunpack.c.l.b16 %v160
    %v457 = vunpack.c.l.b16 %v161
    %v458 = vunpack.c.l.b16 %v162
    %v459 = vunpack.c.l.b16 %v163
    %v460 = vunpack.c.l.b16 %v164
    %v461 = vunpack.c.l.b16 %v165
    %v462 = vunpack.c.l.b16 %v166
    %v463 = vpack.c.b16 %v336, %v335
    %v464 = vpack.c.b16 %v338, %v337
    %v465 = vpack.c.b16 %v340, %v339
    %v466 = vpack.c.b16 %v342, %v341
    %v467 = vpack.c.b16 %v344, %v343
    %v468 = vpack.c.b16 %v346, %v345
    %v469 = vpack.c.b16 %v348, %v347
    %v470 = vpack.c.b16 %v350, %v349
    %v471 = vpack.c.b16 %v352, %v351
    %v472 = vpack.c.b16 %v354, %v353
    %v473 = vpack.c.b16 %v356, %v355
    %v474 = vpack.c.b16 %v358, %v357
    %v475 = vpack.c.b16 %v360, %v359
    %v476 = vpack.c.b16 %v362, %v361
    %v477 = vpack.c.b16 %v364, %v363
    %v478 = vpack.c.b16 %v366, %v365
    %v479 = vpack.c.b16 %v368, %v367
    %v480 = vpack.c.b16 %v370, %v369
    %v481 = vpack.c.b16 %v372, %v371
    %v482 = vpack.c.b16 %v374, %v373
    %v483 = vpack.c.b16 %v376, %v375
    %v484 = vpack.c.b16 %v378, %v377
    %v485 = vpack.c.b16 %v380, %v379
    %v486 = vpack.c.b16 %v382, %v381
    %v487 = vpack.c.b16 %v384, %v383
    %v488 = vpack.c.b16 %v386, %v385
    %v489 = vpack.c.b16 %v388, %v387
    %v490 = vpack.c.b16 %v390, %v389
    %v491 = vpack.c.b16 %v392, %v391
    %v492 = vpack.c.b16 %v394, %v393
    %v493 = vpack.c.b16 %v396, %v395
    %v494 = vpack.c.b16 %v398, %v397
    %v495 = vpack.c.b16 %v400, %v399
    %v496 = vpack.c.b16 %v402, %v401
    %v497 = vpack.c.b16 %v404, %v403
    %v498 = vpack.c.b16 %v406, %v405
    %v499 = vpack.c.b16 %v408, %v407
    %v500 = vpack.c.b16 %v410, %v409
    %v501 = vpack.c.b16 %v412, %v411
    %v502 = vpack.c.b16 %v414, %v413
    %v503 = vpack.c.b16 %v416, %v415
    %v504 = vpack.c.b16 %v418, %v417
    %v505 = vpack.c.b16 %v420, %v419
    %v506 = vpack.c.b16 %v422, %v421
    %v507 = vpack.c.b16 %v424, %v423
    %v508 = vpack.c.b16 %v426, %v425
    %v509 = vpack.c.b16 %v428, %v427
    %v510 = vpack.c.b16 %v430, %v429
    %v511 = vpack.c.b16 %v432, %v431
    %v512 = vpack.c.b16 %v434, %v433
    %v513 = vpack.c.b16 %v436, %v435
    %v514 = vpack.c.b16 %v438, %v437
    %v515 = vpack.c.b16 %v440, %v439
    %v516 = vpack.c.b16 %v442, %v441
    %v517 = vpack.c.b16 %v444, %v443
    %v518 = vpack.c.b16 %v446, %v445
    %v519 = vpack.c.b16 %v448, %v447
    %v520 = vpack.c.b16 %v450, %v449
    %v521 = vpack.c.b16 %v452, %v451
    %v522 = vpack.c.b16 %v454, %v453
    %v523 = vpack.c.b16 %v456, %v455
    %v524 = vpack.c.b16 %v458, %v457
    %v525 = vpack.c.b16 %v460, %v459
    %v526 = vpack.c.b16 %v462, %v461
    %591 = vmatprep.subr.bf16.mxu0 0
    %592 = vmatpush1.bf16.msra.mxu0 %v463
    %593 = vmatprep.subr.bf16.mxu0 0
    %594 = vmatpush1.bf16.msra.mxu0 %v464
    %595 = vmatprep.subr.bf16.mxu0 0
    %596 = vmatpush1.bf16.msra.mxu0 %v465
    %597 = vmatprep.subr.bf16.mxu0 0
    %598 = vmatpush1.bf16.msra.mxu0 %v466
    %599 = vmatprep.subr.bf16.mxu0 0
    %600 = vmatpush1.bf16.msra.mxu0 %v467
    %601 = vmatprep.subr.bf16.mxu0 0
    %602 = vmatpush1.bf16.msra.mxu0 %v468
    %603 = vmatprep.subr.bf16.mxu0 0
    %604 = vmatpush1.bf16.msra.mxu0 %v469
    %605 = vmatprep.subr.bf16.mxu0 0
    %606 = vmatpush1.bf16.msra.mxu0 %v470
    %607 = vmatprep.subr.bf16.mxu0 0
    %608 = vmatpush1.bf16.msra.mxu0 %v471
    %609 = vmatprep.subr.bf16.mxu0 0
    %610 = vmatpush1.bf16.msra.mxu0 %v472
    %611 = vmatprep.subr.bf16.mxu0 0
    %612 = vmatpush1.bf16.msra.mxu0 %v473
    %613 = vmatprep.subr.bf16.mxu0 0
    %614 = vmatpush1.bf16.msra.mxu0 %v474
    %615 = vmatprep.subr.bf16.mxu0 0
    %616 = vmatpush1.bf16.msra.mxu0 %v475
    %617 = vmatprep.subr.bf16.mxu0 0
    %618 = vmatpush1.bf16.msra.mxu0 %v476
    %619 = vmatprep.subr.bf16.mxu0 0
    %620 = vmatpush1.bf16.msra.mxu0 %v477
    %621 = vmatprep.subr.bf16.mxu0 0
    %622 = vmatpush1.bf16.msra.mxu0 %v478
    %623 = vmatprep.mubr.bf16.mxu0 %v192
    %624 = vmatmul.mubr.bf16.gmra.mrb[0].mxu0 %v191
    %v625 = vpop.f32.mrb[0].mxu0
    %v626 = vadd.f32 0.0, %v625
    %v627 = vpop.f32.mrb[0].mxu0
    %v628 = vpop.f32.mrb[0].mxu0
    %v629 = vadd.f32 0.0, %v628
    %v630 = vpop.f32.mrb[0].mxu0
    %631 = vdwg.mxu0
    %632 = vmatprep.subr.bf16.mxu0 0
    %633 = vmatpush1.bf16.msra.mxu0 %v479
    %634 = vmatprep.subr.bf16.mxu0 0
    %635 = vmatpush1.bf16.msra.mxu0 %v480
    %636 = vmatprep.subr.bf16.mxu0 0
    %637 = vmatpush1.bf16.msra.mxu0 %v481
    %638 = vmatprep.subr.bf16.mxu0 0
    %639 = vmatpush1.bf16.msra.mxu0 %v482
    %640 = vmatprep.subr.bf16.mxu0 0
    %641 = vmatpush1.bf16.msra.mxu0 %v483
    %642 = vmatprep.subr.bf16.mxu0 0
    %643 = vmatpush1.bf16.msra.mxu0 %v484
    %644 = vmatprep.subr.bf16.mxu0 0
    %645 = vmatpush1.bf16.msra.mxu0 %v485
    %646 = vmatprep.subr.bf16.mxu0 0
    %647 = vmatpush1.bf16.msra.mxu0 %v486
    %648 = vmatprep.subr.bf16.mxu0 0
    %649 = vmatpush1.bf16.msra.mxu0 %v487
    %650 = vmatprep.subr.bf16.mxu0 0
    %651 = vmatpush1.bf16.msra.mxu0 %v488
    %652 = vmatprep.subr.bf16.mxu0 0
    %653 = vmatpush1.bf16.msra.mxu0 %v489
    %654 = vmatprep.subr.bf16.mxu0 0
    %655 = vmatpush1.bf16.msra.mxu0 %v490
    %656 = vmatprep.subr.bf16.mxu0 0
    %657 = vmatpush1.bf16.msra.mxu0 %v491
    %658 = vmatprep.subr.bf16.mxu0 0
    %659 = vmatpush1.bf16.msra.mxu0 %v492
    %660 = vmatprep.subr.bf16.mxu0 0
    %661 = vmatpush1.bf16.msra.mxu0 %v493
    %662 = vmatprep.subr.bf16.mxu0 0
    %663 = vmatpush1.bf16.msra.mxu0 %v494
    %664 = vmatprep.mubr.bf16.mxu0 %v194
    %665 = vmatmul.mubr.bf16.gmra.mrb[0].mxu0 %v193
    %v666 = vpop.f32.mrb[0].mxu0
    %v667 = vadd.f32 %v626, %v666
    %v668 = vpop.f32.mrb[0].mxu0
    %v669 = vpop.f32.mrb[0].mxu0
    %v670 = vadd.f32 %v629, %v669
    %v671 = vpop.f32.mrb[0].mxu0
    %672 = vdwg.mxu0
    %673 = vmatprep.subr.bf16.mxu0 0
    %674 = vmatpush1.bf16.msra.mxu0 %v495
    %675 = vmatprep.subr.bf16.mxu0 0
    %676 = vmatpush1.bf16.msra.mxu0 %v496
    %677 = vmatprep.subr.bf16.mxu0 0
    %678 = vmatpush1.bf16.msra.mxu0 %v497
    %679 = vmatprep.subr.bf16.mxu0 0
    %680 = vmatpush1.bf16.msra.mxu0 %v498
    %681 = vmatprep.subr.bf16.mxu0 0
    %682 = vmatpush1.bf16.msra.mxu0 %v499
    %683 = vmatprep.subr.bf16.mxu0 0
    %684 = vmatpush1.bf16.msra.mxu0 %v500
    %685 = vmatprep.subr.bf16.mxu0 0
    %686 = vmatpush1.bf16.msra.mxu0 %v501
    %687 = vmatprep.subr.bf16.mxu0 0
    %688 = vmatpush1.bf16.msra.mxu0 %v502
    %689 = vmatprep.subr.bf16.mxu0 0
    %690 = vmatpush1.bf16.msra.mxu0 %v503
    %691 = vmatprep.subr.bf16.mxu0 0
    %692 = vmatpush1.bf16.msra.mxu0 %v504
    %693 = vmatprep.subr.bf16.mxu0 0
    %694 = vmatpush1.bf16.msra.mxu0 %v505
    %695 = vmatprep.subr.bf16.mxu0 0
    %696 = vmatpush1.bf16.msra.mxu0 %v506
    %697 = vmatprep.subr.bf16.mxu0 0
    %698 = vmatpush1.bf16.msra.mxu0 %v507
    %699 = vmatprep.subr.bf16.mxu0 0
    %700 = vmatpush1.bf16.msra.mxu0 %v508
    %701 = vmatprep.subr.bf16.mxu0 0
    %702 = vmatpush1.bf16.msra.mxu0 %v509
    %703 = vmatprep.subr.bf16.mxu0 0
    %704 = vmatpush1.bf16.msra.mxu0 %v510
    %705 = vmatprep.mubr.bf16.mxu0 %v196
    %706 = vmatmul.mubr.bf16.gmra.mrb[0].mxu0 %v195
    %v707 = vpop.f32.mrb[0].mxu0
    %v708 = vadd.f32 %v667, %v707
    %v709 = vpop.f32.mrb[0].mxu0
    %v710 = vpop.f32.mrb[0].mxu0
    %v711 = vadd.f32 %v670, %v710
    %v712 = vpop.f32.mrb[0].mxu0
    %713 = vdwg.mxu0
    %714 = vmatprep.subr.bf16.mxu0 0
    %715 = vmatpush1.bf16.msra.mxu0 %v511
    %716 = vmatprep.subr.bf16.mxu0 0
    %717 = vmatpush1.bf16.msra.mxu0 %v512
    %718 = vmatprep.subr.bf16.mxu0 0
    %719 = vmatpush1.bf16.msra.mxu0 %v513
    %720 = vmatprep.subr.bf16.mxu0 0
    %721 = vmatpush1.bf16.msra.mxu0 %v514
    %722 = vmatprep.subr.bf16.mxu0 0
    %723 = vmatpush1.bf16.msra.mxu0 %v515
    %724 = vmatprep.subr.bf16.mxu0 0
    %725 = vmatpush1.bf16.msra.mxu0 %v516
    %726 = vmatprep.subr.bf16.mxu0 0
    %727 = vmatpush1.bf16.msra.mxu0 %v517
    %728 = vmatprep.subr.bf16.mxu0 0
    %729 = vmatpush1.bf16.msra.mxu0 %v518
    %730 = vmatprep.subr.bf16.mxu0 0
    %731 = vmatpush1.bf16.msra.mxu0 %v519
    %732 = vmatprep.subr.bf16.mxu0 0
    %733 = vmatpush1.bf16.msra.mxu0 %v520
    %734 = vmatprep.subr.bf16.mxu0 0
    %735 = vmatpush1.bf16.msra.mxu0 %v521
    %736 = vmatprep.subr.bf16.mxu0 0
    %737 = vmatpush1.bf16.msra.mxu0 %v522
    %738 = vmatprep.subr.bf16.mxu0 0
    %739 = vmatpush1.bf16.msra.mxu0 %v523
    %740 = vmatprep.subr.bf16.mxu0 0
    %741 = vmatpush1.bf16.msra.mxu0 %v524
    %742 = vmatprep.subr.bf16.mxu0 0
    %743 = vmatpush1.bf16.msra.mxu0 %v525
    %744 = vmatprep.subr.bf16.mxu0 0
    %745 = vmatpush1.bf16.msra.mxu0 %v526
    %746 = vmatprep.mubr.bf16.mxu0 %v198
    %747 = vmatmul.mubr.bf16.gmra.mrb[0].mxu0 %v197
    %v748 = vpop.f32.mrb[0].mxu0
    %v749 = vadd.f32 %v708, %v748
    %v750 = vpop.f32.mrb[0].mxu0
    %v751 = vpop.f32.mrb[0].mxu0
    %v752 = vadd.f32 %v711, %v751
    %v753 = vpop.f32.mrb[0].mxu0
    %754 = vdwg.mxu0
    %v755 = vld [vmem:[%s1] sm:$0xff]
    %v756 = vld [vmem:[%s1 + $0x8] sm:$0xff]
    %758 = vset.pattern.permute.xlu0 0
    %759 = vperm.xlu0 %758, %v755
    %v760 = vpop.permute.xlu0 %759
    %763 = vset.pattern.permute.xlu0 0
    %764 = vperm.xlu0 %763, %v756
    %v765 = vpop.permute.xlu0 %764
    %v767 = vmul.f32 %v749, %v760
    %v768 = vmul.f32 %v752, %v765
    %v769 = vld [vmem:[%s3] sm:$0x1]
    %v771 = vlaneseq
    %v772 = vshrl.u32 %v771, 7
    %v773 = vsub.s32 0, %v772
    %v774 = vrot.slane %v769, %v773
    %v776 = vadd.f32 %v767, %v774
    %v777 = vadd.f32 %v768, %v774
    %v778 = vpack.c.bf16 %v777, %v776
    %v779 = vld [vmem:[%s4] sm:$0xf]
    %v780 = vld [vmem:[%s4 + $0x4] sm:$0xf]
    %v781 = vld [vmem:[%s4 + $0x8] sm:$0xf]
    %v782 = vld [vmem:[%s4 + $0xc] sm:$0xf]
    %v783 = vld [vmem:[%s5] sm:$0x1]
    %v785 = vlaneseq
    %v786 = vshrl.u32 %v785, 7
    %v787 = vsub.s32 0, %v786
    %v788 = vrot.slane %v783, %v787
    %v794 = vunpack.c.l.b16 %v779
    %v795 = vunpack.c.l.b16 %v780
    %v796 = vunpack.c.l.b16 %v781
    %v797 = vunpack.c.l.b16 %v782
    %v798 = vpack.c.b16 %v795, %v794
    %v799 = vpack.c.b16 %v797, %v796
    %vm802 = vcmask 261120
    %v804 = vsel %vm802, %v778, 0
    %806 = vmatprep.subr.bf16.mxu0 0
    %807 = vmatpush1.bf16.msra.mxu0 %v798
    %808 = vmatprep.subr.bf16.mxu0 0
    %809 = vmatpush1.bf16.msra.mxu0 %v799
    %810 = vmatprep.subr.bf16.mxu0 0
    %811 = vmatpush1.bf16.msra.mxu0 0
    %812 = vmatprep.subr.bf16.mxu0 0
    %813 = vmatpush1.bf16.msra.mxu0 0
    %814 = vmatprep.subr.bf16.mxu0 0
    %815 = vmatpush1.bf16.msra.mxu0 0
    %816 = vmatprep.subr.bf16.mxu0 0
    %817 = vmatpush1.bf16.msra.mxu0 0
    %818 = vmatprep.subr.bf16.mxu0 0
    %819 = vmatpush1.bf16.msra.mxu0 0
    %820 = vmatprep.subr.bf16.mxu0 0
    %821 = vmatpush1.bf16.msra.mxu0 0
    %822 = vmatprep.subr.bf16.mxu0 0
    %823 = vmatpush1.bf16.msra.mxu0 0
    %824 = vmatprep.subr.bf16.mxu0 0
    %825 = vmatpush1.bf16.msra.mxu0 0
    %826 = vmatprep.subr.bf16.mxu0 0
    %827 = vmatpush1.bf16.msra.mxu0 0
    %828 = vmatprep.subr.bf16.mxu0 0
    %829 = vmatpush1.bf16.msra.mxu0 0
    %830 = vmatprep.subr.bf16.mxu0 0
    %831 = vmatpush1.bf16.msra.mxu0 0
    %832 = vmatprep.subr.bf16.mxu0 0
    %833 = vmatpush1.bf16.msra.mxu0 0
    %834 = vmatprep.subr.bf16.mxu0 0
    %835 = vmatpush1.bf16.msra.mxu0 0
    %836 = vmatprep.subr.bf16.mxu0 0
    %837 = vmatpush1.bf16.msra.mxu0 0
    %838 = vmatprep.mubr.bf16.mxu0 0
    %839 = vmatmul.mubr.bf16.gmra.mrb[0].mxu0 %v804
    %v840 = vpop.f32.mrb[0].mxu0
    %v841 = vadd.f32 %v788, %v840
    %v842 = vpop.f32.mrb[0].mxu0
    %v843 = vpop.f32.mrb[0].mxu0
    %v844 = vadd.f32 %v788, %v843
    %v845 = vpop.f32.mrb[0].mxu0
    %846 = vdwg.mxu0
    %v847 = vmul.f32 %v841, %v841
    %v848 = vmul.f32 %v844, %v844
    %v849 = vmul.f32 %v841, %v847
    %v850 = vmul.f32 %v844, %v848
    %v851 = vmul.f32 %v849, 0.044715
    %v852 = vmul.f32 %v850, 0.044715
    %v853 = vadd.f32 %v841, %v851
    %v854 = vadd.f32 %v844, %v852
    %v855 = vmul.f32 %v853, 0.7978846
    %v856 = vmul.f32 %v854, 0.7978846
    %v857 = vtanh.pop %v855
    %v858 = vtanh.pop %v856
    %v859 = vadd.f32 %v857, 1.0
    %v860 = vadd.f32 %v858, 1.0
    %v861 = vmul.f32 %v859, 0.5
    %v862 = vmul.f32 %v860, 0.5
    %v863 = vmul.f32 %v841, %v861
    %v864 = vmul.f32 %v844, %v862
    %v865 = vpack.c.bf16 %v864, %v863
    %v866 = vld [vmem:[%s6] sm:$0xf]
    %v867 = vld [vmem:[%s6 + $0x4] sm:$0xf]
    %v868 = vld [vmem:[%s6 + $0x8] sm:$0xf]
    %v869 = vld [vmem:[%s6 + $0xc] sm:$0xf]
    %v870 = vld [vmem:[%s6 + $0x10] sm:$0xf]
    %v871 = vld [vmem:[%s6 + $0x14] sm:$0xf]
    %v872 = vld [vmem:[%s6 + $0x18] sm:$0xf]
    %v873 = vld [vmem:[%s6 + $0x1c] sm:$0xf]
    %v874 = vld [vmem:[%s7] sm:$0x1]
    %v876 = vlaneseq
    %v877 = vshrl.u32 %v876, 7
    %v878 = vsub.s32 0, %v877
    %v879 = vrot.slane %v874, %v878
    %v889 = vunpack.c.l.b16 %v866
    %v890 = vunpack.c.l.b16 %v867
    %v891 = vunpack.c.l.b16 %v868
    %v892 = vunpack.c.l.b16 %v869
    %v893 = vunpack.c.l.b16 %v870
    %v894 = vunpack.c.l.b16 %v871
    %v895 = vunpack.c.l.b16 %v872
    %v896 = vunpack.c.l.b16 %v873
    %v897 = vpack.c.b16 %v890, %v889
    %v898 = vpack.c.b16 %v892, %v891
    %v899 = vpack.c.b16 %v894, %v893
    %v900 = vpack.c.b16 %v896, %v895
    %vm905 = vcmask 523264
    %v907 = vsel %vm905, %v865, 0
    %909 = vmatprep.subr.bf16.mxu0 0
    %910 = vmatpush1.bf16.msra.mxu0 %v897
    %911 = vmatprep.subr.bf16.mxu0 0
    %912 = vmatpush1.bf16.msra.mxu0 %v898
    %913 = vmatprep.subr.bf16.mxu0 0
    %914 = vmatpush1.bf16.msra.mxu0 %v899
    %915 = vmatprep.subr.bf16.mxu0 0
    %916 = vmatpush1.bf16.msra.mxu0 %v900
    %917 = vmatprep.subr.bf16.mxu0 0
    %918 = vmatpush1.bf16.msra.mxu0 0
    %919 = vmatprep.subr.bf16.mxu0 0
    %920 = vmatpush1.bf16.msra.mxu0 0
    %921 = vmatprep.subr.bf16.mxu0 0
    %922 = vmatpush1.bf16.msra.mxu0 0
    %923 = vmatprep.subr.bf16.mxu0 0
    %924 = vmatpush1.bf16.msra.mxu0 0
    %925 = vmatprep.subr.bf16.mxu0 0
    %926 = vmatpush1.bf16.msra.mxu0 0
    %927 = vmatprep.subr.bf16.mxu0 0
    %928 = vmatpush1.bf16.msra.mxu0 0
    %929 = vmatprep.subr.bf16.mxu0 0
    %930 = vmatpush1.bf16.msra.mxu0 0
    %931 = vmatprep.subr.bf16.mxu0 0
    %932 = vmatpush1.bf16.msra.mxu0 0
    %933 = vmatprep.subr.bf16.mxu0 0
    %934 = vmatpush1.bf16.msra.mxu0 0
    %935 = vmatprep.subr.bf16.mxu0 0
    %936 = vmatpush1.bf16.msra.mxu0 0
    %937 = vmatprep.subr.bf16.mxu0 0
    %938 = vmatpush1.bf16.msra.mxu0 0
    %939 = vmatprep.subr.bf16.mxu0 0
    %940 = vmatpush1.bf16.msra.mxu0 0
    %941 = vmatprep.mubr.bf16.mxu0 0
    %942 = vmatmul.mubr.bf16.gmra.mrb[0].mxu0 %v907
    %v943 = vpop.f32.mrb[0].mxu0
    %v944 = vadd.f32 %v879, %v943
    %v945 = vpop.f32.mrb[0].mxu0
    %v946 = vpop.f32.mrb[0].mxu0
    %v947 = vadd.f32 %v879, %v946
    %v948 = vpop.f32.mrb[0].mxu0
    %949 = vdwg.mxu0
    %950 = vst [vmem:[#allocation2] sm:$0xff] %v944
    %951 = vst [vmem:[#allocation2 + $0x8] sm:$0xff] %v947
    // Predicated region
    $region34: #{tpu_custom_call.1} parent=1 // pred_check
      _
    $region35: #{tpu_custom_call.1} parent=1 // pred_check_branch
      %953 = sbr.rel (0) target = $region37
    $region36: #{tpu_custom_call.1} parent=1 // pred_region
      %s955 = ssub.s32 256, 256
      %956 = vsyncadd [#allocation3], %s955
      %s957 = sshll.u32 [#allocation2], 4
      %s958 = int_to_ptr.vmem [resolvable:$true] %s957
      %963 = dma.vmem_to_hbm [thread:$0]  %s958, 256, %s8, [#allocation3], 128, 128, 8
    $region37: #{tpu_custom_call.1} parent=1 // pred_fallthru
      _
    // Predicated region
    $region38: #{tpu_custom_call.1} parent=1 // pred_check
      _
    $region39: #{tpu_custom_call.1} parent=1 // pred_check_branch
      %965 = sbr.rel (0) target = $region41
    $region40: #{tpu_custom_call.1} parent=1 // pred_region
      %966 = dma.done [#allocation3], 256
    $region41: #{tpu_custom_call.1} parent=1 // pred_fallthru
      _
    %967 = vsyncpa [#allocation3], 1

</llo_original>
